<compile_context>
chip_gen: v5e
topology: v5e:2x2
jax: 0.10.0
libtpu: 0.0.40
codegen_flags: <defaults>
</compile_context>

<pallas_src>
import functools
import math

import numpy as np
import jax
import jax.numpy as jnp
from jax.experimental import pallas as pl
from jax.experimental.pallas import tpu as pltpu


NEG_BIG = -1e30        # logit assigned to non-edges (finite, representable in f32)
VALID_THRESH = -1e20   # rows whose running max stays below this had no edge


def _round_up(x, m):
    return ((x + m - 1) // m) * m


# ----------------------------------------------------------------------------
# Kernel body: one (destination-row tile, source-column tile) grid step.
#   a_dst_ref : [tm, H]        f32   <xw_h[i], att_dst_h> for dst rows in tile
#   a_src_ref : [H, tk]        f32   <xw_h[j], att_src_h> for src cols in tile
#   mask_ref  : [tm, tk]       int8  1 where edge j->i exists
#   xw_ref    : [N_pad, H*C]   bf16  grid-resident x @ W (constant index map)
#   out_ref   : [tm, H*C]      f32   written only on the last source step
#   m_sc/l_sc : [H, tm, 1]     f32   online-softmax running max / denom
#   acc_sc    : [H, tm, C]     f32   online-softmax running numerator
# ----------------------------------------------------------------------------
def _gat_kernel(a_dst_ref, a_src_ref, mask_ref, xw_ref, out_ref,
                m_sc, l_sc, acc_sc, *, heads, ch, tk):
    k = pl.program_id(1)
    nk = pl.num_programs(1)

    @pl.when(k == 0)
    def _init():
        m_sc[...] = jnp.full_like(m_sc, NEG_BIG)
        l_sc[...] = jnp.zeros_like(l_sc)
        acc_sc[...] = jnp.zeros_like(acc_sc)

    edge = mask_ref[...] != 0                              # [tm, tk] bool
    k_off = pl.multiple_of(k * tk, tk)

    for h in range(heads):                                 # static unroll over heads
        e = a_dst_ref[:, h:h + 1] + a_src_ref[h:h + 1, :]  # [tm, tk]
        e = jnp.where(e > 0, e, 0.2 * e)                   # LeakyReLU(0.2)
        e = jnp.where(edge, e, jnp.float32(NEG_BIG))       # mask non-edges

        m_prev = m_sc[h]                                   # [tm, 1]
        m_new = jnp.maximum(m_prev, jnp.max(e, axis=-1, keepdims=True))
        corr = jnp.exp(m_prev - m_new)                     # [tm, 1]
        # TODO(synk): on v7x, consider bf16 exp here if the single EUP slot
        # becomes the bottleneck once the HBM streams are shrunk.
        p = jnp.exp(e - m_new)                             # [tm, tk], 0 on non-edges

        l_sc[h] = corr * l_sc[h] + jnp.sum(p, axis=-1, keepdims=True)
        xw_h = xw_ref[pl.ds(k_off, tk), h * ch:(h + 1) * ch]     # [tk, C] bf16
        pv = jnp.dot(p.astype(jnp.bfloat16), xw_h,
                     preferred_element_type=jnp.float32)         # [tm, C]
        acc_sc[h] = corr * acc_sc[h] + pv
        m_sc[h] = m_new

    @pl.when(k == nk - 1)
    def _finalize():
        # Normalize AFTER the matmul: a [tm, C] scale instead of [tm, N].
        for h in range(heads):
            valid = (m_sc[h] > jnp.float32(VALID_THRESH)).astype(jnp.float32)
            inv = pl.reciprocal(jnp.maximum(l_sc[h], jnp.float32(1e-16)),
                                approx=True) * valid             # [tm, 1]
            out_ref[:, h * ch:(h + 1) * ch] = (acc_sc[h] * inv).astype(out_ref.dtype)


# ----------------------------------------------------------------------------
# Wrapper: equivalent of GAT.forward -> (out, (edge_index, alpha_or_None))
# ----------------------------------------------------------------------------
@functools.partial(jax.jit, static_argnames=("return_weight", "tile_m", "tile_k"))
def gat_forward(x, edge_index, W3, att_src, att_dst, return_weight=False,
                tile_m=256, tile_k=512):
    """x: [N, F_in] f32; edge_index: [2, E] (row 0 = src, row 1 = dst);
    W3: [H, F_in, C]; att_src, att_dst: [H, C]."""
    N, F_in = x.shape
    H, _, C = W3.shape
    src = edge_index[0].astype(jnp.int32)
    dst = edge_index[1].astype(jnp.int32)

    # ---- XLA prologue: fused projection + per-node attention logits --------
    W_all = jnp.transpose(W3, (1, 0, 2)).reshape(F_in, H * C)        # [F_in, H*C]
    xw = jnp.dot(x, W_all, preferred_element_type=jnp.float32)       # [N, H*C]
    xw_h = xw.reshape(N, H, C)
    a_src = jnp.einsum('nhc,hc->nh', xw_h, att_src)                  # [N, H]
    a_dst = jnp.einsum('nhc,hc->nh', xw_h, att_dst)                  # [N, H]

    # ---- tile sizes (dst rows x src cols) -----------------------------------
    tm = _round_up(max(32, min(int(tile_m), N)), 32)    # int8-sublane-safe
    tk = _round_up(max(128, min(int(tile_k), N)), 128)  # lane-aligned
    n_pad = _round_up(N, math.lcm(tm, tk))
    pad = n_pad - N
    n_m, n_k = n_pad // tm, n_pad // tk

    a_dst_p = jnp.pad(a_dst, ((0, pad), (0, 0)))                     # [N_pad, H]
    a_src_p = jnp.pad(a_src.T, ((0, 0), (0, pad)))                   # [H, N_pad]
    xw_p = jnp.pad(xw, ((0, pad), (0, 0))).astype(jnp.bfloat16)      # [N_pad, H*C]
    # int8 adjacency mask built directly in its final dtype (1 = edge j->i).
    # TODO(synk): cache this across calls when the graph is static; bit-pack
    # (8 cols/byte) on v5e to shrink the dominant N^2 stream further.
    mask = jnp.zeros((n_pad, n_pad), jnp.int8).at[dst, src].set(1)

    kernel = functools.partial(_gat_kernel, heads=H, ch=C, tk=tk)

    out_pad = pl.pallas_call(
        kernel,
        out_shape=jax.ShapeDtypeStruct((n_pad, H * C), jnp.float32),
        grid_spec=pltpu.PrefetchScalarGridSpec(
            num_scalar_prefetch=0,
            grid=(n_m, n_k),                                   # reduction axis last
            in_specs=[
                pl.BlockSpec((tm, H), lambda m, k: (m, 0)),        # a_dst tile
                pl.BlockSpec((H, tk), lambda m, k: (0, k)),        # a_src block
                pl.BlockSpec((tm, tk), lambda m, k: (m, k)),       # int8 mask tile
                # Grid-resident xw: constant index map => DMAed from HBM once.
                # (pipeline_mode=pl.Buffered(1) would also drop its 2nd buffer.)
                pl.BlockSpec((n_pad, H * C), lambda m, k: (0, 0)),
            ],
            out_specs=pl.BlockSpec((tm, H * C), lambda m, k: (m, 0)),
            scratch_shapes=[
                pltpu.VMEM((H, tm, 1), jnp.float32),    # running max
                pltpu.VMEM((H, tm, 1), jnp.float32),    # running denom
                pltpu.VMEM((H, tm, C), jnp.float32),    # running numerator
            ]),
        compiler_params=pltpu.CompilerParams(
            # m parallel (megacore shards the mask cleanly on v7x), k arbitrary
            # (carries the online-softmax accumulator).
            dimension_semantics=("parallel", "arbitrary"),
            # Tiled design keeps VMEM O(tm*tk) + resident xw; 40 MiB is safe on
            # v7x (64 MiB physical) and comfortable on v5e/v6e.
            vmem_limit_bytes=40 * 1024 * 1024),
    )(a_dst_p, a_src_p, mask, xw_p)

    out = out_pad[:N]

    if return_weight:
        # Per-edge attention weights [E, H] (PyG return_attention_weights fmt),
        # recomputed with an O(E*H) segment softmax on the already-computed
        # logits instead of a dense H*N^2 writeback + gather.
        e = a_src[src] + a_dst[dst]
        e = jnp.where(e > 0, e, 0.2 * e)
        e_max = jax.ops.segment_max(e, dst, num_segments=N)
        p = jnp.exp(e - e_max[dst])
        s = jax.ops.segment_sum(p, dst, num_segments=N)
        alpha = p / s[dst]
        return out, (edge_index, alpha)
    return out, (edge_index, None)


# ----------------------------------------------------------------------------
# Pure-JAX reference (edge-list / segment-softmax formulation) for checking
# ----------------------------------------------------------------------------
def gat_reference(x, edge_index, W3, att_src, att_dst):
    H, F_in, C = W3.shape
    N = x.shape[0]
    src, dst = edge_index[0], edge_index[1]
    xw = jnp.einsum('nf,hfc->nhc', x, W3)                            # [N, H, C]
    a_src = jnp.sum(xw * att_src[None], -1)                          # [N, H]
    a_dst = jnp.sum(xw * att_dst[None], -1)                          # [N, H]
    e = a_src[src] + a_dst[dst]                                      # [E, H]
    e = jnp.where(e > 0, e, 0.2 * e)
    e_max = jax.ops.segment_max(e, dst, num_segments=N)
    p = jnp.exp(e - e_max[dst])
    s = jax.ops.segment_sum(p, dst, num_segments=N)
    alpha = p / s[dst]                                               # [E, H]
    msg = xw[src] * alpha[..., None]
    out = jax.ops.segment_sum(msg, dst, num_segments=N)              # [N, H, C]
    return out.reshape(N, H * C), alpha


def _run_case(N, F_in, C, H, p_edge, seed, tile_m, tile_k):
    key = jax.random.PRNGKey(seed)
    k_x, k_adj, k_w, k_as, k_ad = jax.random.split(key, 5)

    x = jax.random.normal(k_x, (N, F_in), jnp.float32)
    adj = jax.random.bernoulli(k_adj, p_edge, (N, N))
    src_np, dst_np = np.nonzero(np.asarray(adj))
    edge_index = jnp.asarray(np.stack([src_np, dst_np]), dtype=jnp.int32)

    W3 = jax.random.normal(k_w, (H, F_in, C), jnp.float32) * 0.2
    att_src = jax.random.normal(k_as, (H, C), jnp.float32) * 0.2
    att_dst = jax.random.normal(k_ad, (H, C), jnp.float32) * 0.2

    out_only, _ = gat_forward(x, edge_index, W3, att_src, att_dst,
                              return_weight=False, tile_m=tile_m, tile_k=tile_k)
    out, (_, alpha) = gat_forward(x, edge_index, W3, att_src, att_dst,
                                  return_weight=True, tile_m=tile_m, tile_k=tile_k)
    out = jax.block_until_ready(out)
    out_only = jax.block_until_ready(out_only)
    alpha = jax.block_until_ready(alpha)

    out_ref, alpha_ref = gat_reference(x, edge_index, W3, att_src, att_dst)
    # bf16 MXU operands + approx reciprocal -> relaxed tolerance.
    np.testing.assert_allclose(np.asarray(out), np.asarray(out_ref),
                               rtol=2e-2, atol=2e-2)
    np.testing.assert_allclose(np.asarray(out_only), np.asarray(out_ref),
                               rtol=2e-2, atol=2e-2)
    np.testing.assert_allclose(np.asarray(alpha), np.asarray(alpha_ref),
                               rtol=2e-2, atol=2e-2)


if __name__ == "__main__":
    # Case 1: tiny shapes (C < 128, H*C < 128 -> full-extent lane block),
    # single source block, several destination-row tiles.
    _run_case(N=16, F_in=8, C=8, H=2, p_edge=0.3, seed=0, tile_m=256, tile_k=512)
    # Case 2: lane-dense output (H*C = 256), multiple destination AND source
    # tiles (exercises the online-softmax accumulation across source blocks)
    # plus row/column padding (N=200 -> N_pad=256).
    _run_case(N=200, F_in=16, C=128, H=2, p_edge=0.1, seed=0, tile_m=64, tile_k=128)
    print("KERNEL_OK")
</pallas_src>

<mosaic_0001>
module attributes {stable_mosaic.version = 11 : i64} {
  func.func @_gat_kernel(%arg0: i32, %arg1: i32, %arg2: memref<32x2xf32, #tpu.memory_space<vmem>>, %arg3: memref<2x128xf32, #tpu.memory_space<vmem>>, %arg4: memref<32x128xi8, #tpu.memory_space<vmem>>, %arg5: memref<128x16xbf16, #tpu.memory_space<vmem>>, %arg6: memref<32x16xf32, #tpu.memory_space<vmem>>, %arg7: memref<2x32x1xf32, #tpu.memory_space<vmem>>, %arg8: memref<2x32x1xf32, #tpu.memory_space<vmem>>, %arg9: memref<2x32x8xf32, #tpu.memory_space<vmem>>) attributes {dimension_semantics = [#tpu.dimension_semantics<parallel>, #tpu.dimension_semantics<arbitrary>], iteration_bounds = array<i64: 4, 1>, scalar_prefetch = 0 : i64, scratch_operands = 3 : i64, tpu.core_type = #tpu.core_type<tc>, window_params = [{transform_indices = @transform_0, window_bounds = array<i64: 32, 2>}, {transform_indices = @transform_1, window_bounds = array<i64: 2, 128>}, {transform_indices = @transform_2, window_bounds = array<i64: 32, 128>}, {pipeline_mode = #tpu.pipeline_mode<synchronous>, transform_indices = @transform_3, window_bounds = array<i64: 128, 16>}, {transform_indices = @transform_4, window_bounds = array<i64: 32, 16>}]} {
    %c0_i32 = arith.constant 0 : i32
    %0 = arith.cmpi eq, %arg1, %c0_i32 : i32
    %1 = arith.extui %0 : i1 to i32
    %c0_i32_0 = arith.constant 0 : i32
    %2 = arith.cmpi ne, %1, %c0_i32_0 : i32
    scf.if %2 {
      %cst_59 = arith.constant -1.000000e+30 : f32
      %103 = vector.broadcast %cst_59 : f32 to vector<2x32x1xf32>
      %c0_60 = arith.constant 0 : index
      %c0_61 = arith.constant 0 : index
      %c0_62 = arith.constant 0 : index
      %104 = vector.load %arg7[%c0_60, %c0_61, %c0_62] : memref<2x32x1xf32, #tpu.memory_space<vmem>>, vector<2x32x1xf32>
      tpu.vector_store %arg7[%c0_60, %c0_61, %c0_62], %103 {strides = array<i32>} : memref<2x32x1xf32, #tpu.memory_space<vmem>>, vector<2x32x1xf32>,
      %cst_63 = arith.constant 0.000000e+00 : f32
      %105 = vector.broadcast %cst_63 : f32 to vector<2x32x1xf32>
      %c0_64 = arith.constant 0 : index
      %c0_65 = arith.constant 0 : index
      %c0_66 = arith.constant 0 : index
      %106 = vector.load %arg8[%c0_64, %c0_65, %c0_66] : memref<2x32x1xf32, #tpu.memory_space<vmem>>, vector<2x32x1xf32>
      tpu.vector_store %arg8[%c0_64, %c0_65, %c0_66], %105 {strides = array<i32>} : memref<2x32x1xf32, #tpu.memory_space<vmem>>, vector<2x32x1xf32>,
      %cst_67 = arith.constant 0.000000e+00 : f32
      %107 = vector.broadcast %cst_67 : f32 to vector<2x32x8xf32>
      %c0_68 = arith.constant 0 : index
      %c0_69 = arith.constant 0 : index
      %c0_70 = arith.constant 0 : index
      %108 = vector.load %arg9[%c0_68, %c0_69, %c0_70] : memref<2x32x8xf32, #tpu.memory_space<vmem>>, vector<2x32x8xf32>
      tpu.vector_store %arg9[%c0_68, %c0_69, %c0_70], %107 {strides = array<i32>} : memref<2x32x8xf32, #tpu.memory_space<vmem>>, vector<2x32x8xf32>,
    } else {
    }
    %c0 = arith.constant 0 : index
    %c0_1 = arith.constant 0 : index
    %3 = vector.load %arg4[%c0, %c0_1] : memref<32x128xi8, #tpu.memory_space<vmem>>, vector<32x128xi8>
    %c0_i8 = arith.constant 0 : i8
    %4 = vector.broadcast %c0_i8 : i8 to vector<32x128xi8>
    %5 = arith.cmpi ne, %3, %4 : vector<32x128xi8>
    %c128_i32 = arith.constant 128 : i32
    %6 = arith.muli %arg1, %c128_i32 : i32
    %7 = tpu.assume_multiple %6, 128 : i32
    %c0_2 = arith.constant 0 : index
    %c0_3 = arith.constant 0 : index
    %8 = vector.load %arg2[%c0_2, %c0_3] : memref<32x2xf32, #tpu.memory_space<vmem>>, vector<32x1xf32>
    %c0_4 = arith.constant 0 : index
    %c0_5 = arith.constant 0 : index
    %9 = vector.load %arg3[%c0_4, %c0_5] : memref<2x128xf32, #tpu.memory_space<vmem>>, vector<1x128xf32>
    %10 = vector.broadcast %8 : vector<32x1xf32> to vector<32x128xf32>
    %11 = vector.broadcast %9 : vector<1x128xf32> to vector<32x128xf32>
    %12 = arith.addf %10, %11 : vector<32x128xf32>
    %cst = arith.constant 0.000000e+00 : f32
    %13 = vector.broadcast %cst : f32 to vector<32x128xf32>
    %14 = arith.cmpf ogt, %12, %13 : vector<32x128xf32>
    %cst_6 = arith.constant 2.000000e-01 : f32
    %15 = vector.broadcast %cst_6 : f32 to vector<32x128xf32>
    %16 = arith.mulf %15, %12 : vector<32x128xf32>
    %17 = arith.select %14, %12, %16 : vector<32x128xi1>, vector<32x128xf32>
    %cst_7 = arith.constant -1.000000e+30 : f32
    %18 = vector.broadcast %cst_7 : f32 to vector<32x128xf32>
    %19 = arith.select %5, %17, %18 : vector<32x128xi1>, vector<32x128xf32>
    %c0_8 = arith.constant 0 : index
    %c0_9 = arith.constant 0 : index
    %c0_10 = arith.constant 0 : index
    %20 = vector.load %arg7[%c0_8, %c0_9, %c0_10] : memref<2x32x1xf32, #tpu.memory_space<vmem>>, vector<1x32x1xf32>
    %21 = vector.shape_cast %20 : vector<1x32x1xf32> to vector<32x1xf32>
    %cst_11 = arith.constant dense<0xFF800000> : vector<32xf32>
    %22 = vector.multi_reduction <maximumf>, %19, %cst_11 [1] : vector<32x128xf32> to vector<32xf32>
    %23 = vector.shape_cast %22 : vector<32xf32> to vector<32x1xf32>
    %24 = arith.maximumf %21, %23 : vector<32x1xf32>
    %25 = arith.subf %21, %24 : vector<32x1xf32>
    %26 = math.exp %25 : vector<32x1xf32>
    %27 = vector.broadcast %24 : vector<32x1xf32> to vector<32x128xf32>
    %28 = arith.subf %19, %27 : vector<32x128xf32>
    %29 = math.exp %28 : vector<32x128xf32>
    %c0_12 = arith.constant 0 : index
    %c0_13 = arith.constant 0 : index
    %c0_14 = arith.constant 0 : index
    %30 = vector.load %arg8[%c0_12, %c0_13, %c0_14] : memref<2x32x1xf32, #tpu.memory_space<vmem>>, vector<1x32x1xf32>
    %31 = vector.shape_cast %30 : vector<1x32x1xf32> to vector<32x1xf32>
    %32 = arith.mulf %26, %31 : vector<32x1xf32>
    %cst_15 = arith.constant dense<0.000000e+00> : vector<32xf32>
    %33 = vector.multi_reduction <add>, %29, %cst_15 [1] : vector<32x128xf32> to vector<32xf32>
    %34 = vector.shape_cast %33 : vector<32xf32> to vector<32x1xf32>
    %35 = arith.addf %32, %34 : vector<32x1xf32>
    %c0_16 = arith.constant 0 : index
    %c0_17 = arith.constant 0 : index
    %c0_18 = arith.constant 0 : index
    %36 = vector.load %arg8[%c0_16, %c0_17, %c0_18] : memref<2x32x1xf32, #tpu.memory_space<vmem>>, vector<1x32x1xf32>
    %37 = vector.shape_cast %36 : vector<1x32x1xf32> to vector<32x1xf32>
    %38 = vector.shape_cast %35 : vector<32x1xf32> to vector<1x32x1xf32>
    tpu.vector_store %arg8[%c0_16, %c0_17, %c0_18], %38 {strides = array<i32>} : memref<2x32x1xf32, #tpu.memory_space<vmem>>, vector<1x32x1xf32>,
    %39 = arith.index_cast %7 : i32 to index
    %c0_19 = arith.constant 0 : index
    %40 = vector.load %arg5[%39, %c0_19] : memref<128x16xbf16, #tpu.memory_space<vmem>>, vector<128x8xbf16>
    %41 = arith.truncf %29 : vector<32x128xf32> to vector<32x128xbf16>
    %cst_20 = arith.constant dense<0.000000e+00> : vector<32x8xf32>
    %42 = tpu.matmul %41, %40, %cst_20 {dimension_numbers = #tpu.dot_dimension_numbers<[1], [0], [0], [1], [0, 0, 1, 1], [], []>} : vector<32x128xbf16>, vector<128x8xbf16>, vector<32x8xf32> -> vector<32x8xf32>
    %c0_21 = arith.constant 0 : index
    %c0_22 = arith.constant 0 : index
    %c0_23 = arith.constant 0 : index
    %43 = vector.load %arg9[%c0_21, %c0_22, %c0_23] : memref<2x32x8xf32, #tpu.memory_space<vmem>>, vector<1x32x8xf32>
    %44 = vector.shape_cast %43 : vector<1x32x8xf32> to vector<32x8xf32>
    %45 = vector.broadcast %26 : vector<32x1xf32> to vector<32x8xf32>
    %46 = arith.mulf %45, %44 : vector<32x8xf32>
    %47 = arith.addf %46, %42 : vector<32x8xf32>
    %c0_24 = arith.constant 0 : index
    %c0_25 = arith.constant 0 : index
    %c0_26 = arith.constant 0 : index
    %48 = vector.load %arg9[%c0_24, %c0_25, %c0_26] : memref<2x32x8xf32, #tpu.memory_space<vmem>>, vector<1x32x8xf32>
    %49 = vector.shape_cast %48 : vector<1x32x8xf32> to vector<32x8xf32>
    %50 = vector.shape_cast %47 : vector<32x8xf32> to vector<1x32x8xf32>
    tpu.vector_store %arg9[%c0_24, %c0_25, %c0_26], %50 {strides = array<i32>} : memref<2x32x8xf32, #tpu.memory_space<vmem>>, vector<1x32x8xf32>,
    %c0_27 = arith.constant 0 : index
    %c0_28 = arith.constant 0 : index
    %c0_29 = arith.constant 0 : index
    %51 = vector.load %arg7[%c0_27, %c0_28, %c0_29] : memref<2x32x1xf32, #tpu.memory_space<vmem>>, vector<1x32x1xf32>
    %52 = vector.shape_cast %51 : vector<1x32x1xf32> to vector<32x1xf32>
    %53 = vector.shape_cast %24 : vector<32x1xf32> to vector<1x32x1xf32>
    tpu.vector_store %arg7[%c0_27, %c0_28, %c0_29], %53 {strides = array<i32>} : memref<2x32x1xf32, #tpu.memory_space<vmem>>, vector<1x32x1xf32>,
    %c0_30 = arith.constant 0 : index
    %c1 = arith.constant 1 : index
    %54 = vector.load %arg2[%c0_30, %c1] : memref<32x2xf32, #tpu.memory_space<vmem>>, vector<32x1xf32>
    %c1_31 = arith.constant 1 : index
    %c0_32 = arith.constant 0 : index
    %55 = vector.load %arg3[%c1_31, %c0_32] : memref<2x128xf32, #tpu.memory_space<vmem>>, vector<1x128xf32>
    %56 = vector.broadcast %54 : vector<32x1xf32> to vector<32x128xf32>
    %57 = vector.broadcast %55 : vector<1x128xf32> to vector<32x128xf32>
    %58 = arith.addf %56, %57 : vector<32x128xf32>
    %cst_33 = arith.constant 0.000000e+00 : f32
    %59 = vector.broadcast %cst_33 : f32 to vector<32x128xf32>
    %60 = arith.cmpf ogt, %58, %59 : vector<32x128xf32>
    %cst_34 = arith.constant 2.000000e-01 : f32
    %61 = vector.broadcast %cst_34 : f32 to vector<32x128xf32>
    %62 = arith.mulf %61, %58 : vector<32x128xf32>
    %63 = arith.select %60, %58, %62 : vector<32x128xi1>, vector<32x128xf32>
    %cst_35 = arith.constant -1.000000e+30 : f32
    %64 = vector.broadcast %cst_35 : f32 to vector<32x128xf32>
    %65 = arith.select %5, %63, %64 : vector<32x128xi1>, vector<32x128xf32>
    %c1_36 = arith.constant 1 : index
    %c0_37 = arith.constant 0 : index
    %c0_38 = arith.constant 0 : index
    %66 = vector.load %arg7[%c1_36, %c0_37, %c0_38] : memref<2x32x1xf32, #tpu.memory_space<vmem>>, vector<1x32x1xf32>
    %67 = vector.shape_cast %66 : vector<1x32x1xf32> to vector<32x1xf32>
    %cst_39 = arith.constant dense<0xFF800000> : vector<32xf32>
    %68 = vector.multi_reduction <maximumf>, %65, %cst_39 [1] : vector<32x128xf32> to vector<32xf32>
    %69 = vector.shape_cast %68 : vector<32xf32> to vector<32x1xf32>
    %70 = arith.maximumf %67, %69 : vector<32x1xf32>
    %71 = arith.subf %67, %70 : vector<32x1xf32>
    %72 = math.exp %71 : vector<32x1xf32>
    %73 = vector.broadcast %70 : vector<32x1xf32> to vector<32x128xf32>
    %74 = arith.subf %65, %73 : vector<32x128xf32>
    %75 = math.exp %74 : vector<32x128xf32>
    %c1_40 = arith.constant 1 : index
    %c0_41 = arith.constant 0 : index
    %c0_42 = arith.constant 0 : index
    %76 = vector.load %arg8[%c1_40, %c0_41, %c0_42] : memref<2x32x1xf32, #tpu.memory_space<vmem>>, vector<1x32x1xf32>
    %77 = vector.shape_cast %76 : vector<1x32x1xf32> to vector<32x1xf32>
    %78 = arith.mulf %72, %77 : vector<32x1xf32>
    %cst_43 = arith.constant dense<0.000000e+00> : vector<32xf32>
    %79 = vector.multi_reduction <add>, %75, %cst_43 [1] : vector<32x128xf32> to vector<32xf32>
    %80 = vector.shape_cast %79 : vector<32xf32> to vector<32x1xf32>
    %81 = arith.addf %78, %80 : vector<32x1xf32>
    %c1_44 = arith.constant 1 : index
    %c0_45 = arith.constant 0 : index
    %c0_46 = arith.constant 0 : index
    %82 = vector.load %arg8[%c1_44, %c0_45, %c0_46] : memref<2x32x1xf32, #tpu.memory_space<vmem>>, vector<1x32x1xf32>
    %83 = vector.shape_cast %82 : vector<1x32x1xf32> to vector<32x1xf32>
    %84 = vector.shape_cast %81 : vector<32x1xf32> to vector<1x32x1xf32>
    tpu.vector_store %arg8[%c1_44, %c0_45, %c0_46], %84 {strides = array<i32>} : memref<2x32x1xf32, #tpu.memory_space<vmem>>, vector<1x32x1xf32>,
    %85 = arith.index_cast %7 : i32 to index
    %c8 = arith.constant 8 : index
    %86 = vector.load %arg5[%85, %c8] : memref<128x16xbf16, #tpu.memory_space<vmem>>, vector<128x8xbf16>
    %87 = arith.truncf %75 : vector<32x128xf32> to vector<32x128xbf16>
    %cst_47 = arith.constant dense<0.000000e+00> : vector<32x8xf32>
    %88 = tpu.matmul %87, %86, %cst_47 {dimension_numbers = #tpu.dot_dimension_numbers<[1], [0], [0], [1], [0, 0, 1, 1], [], []>} : vector<32x128xbf16>, vector<128x8xbf16>, vector<32x8xf32> -> vector<32x8xf32>
    %c1_48 = arith.constant 1 : index
    %c0_49 = arith.constant 0 : index
    %c0_50 = arith.constant 0 : index
    %89 = vector.load %arg9[%c1_48, %c0_49, %c0_50] : memref<2x32x8xf32, #tpu.memory_space<vmem>>, vector<1x32x8xf32>
    %90 = vector.shape_cast %89 : vector<1x32x8xf32> to vector<32x8xf32>
    %91 = vector.broadcast %72 : vector<32x1xf32> to vector<32x8xf32>
    %92 = arith.mulf %91, %90 : vector<32x8xf32>
    %93 = arith.addf %92, %88 : vector<32x8xf32>
    %c1_51 = arith.constant 1 : index
    %c0_52 = arith.constant 0 : index
    %c0_53 = arith.constant 0 : index
    %94 = vector.load %arg9[%c1_51, %c0_52, %c0_53] : memref<2x32x8xf32, #tpu.memory_space<vmem>>, vector<1x32x8xf32>
    %95 = vector.shape_cast %94 : vector<1x32x8xf32> to vector<32x8xf32>
    %96 = vector.shape_cast %93 : vector<32x8xf32> to vector<1x32x8xf32>
    tpu.vector_store %arg9[%c1_51, %c0_52, %c0_53], %96 {strides = array<i32>} : memref<2x32x8xf32, #tpu.memory_space<vmem>>, vector<1x32x8xf32>,
    %c1_54 = arith.constant 1 : index
    %c0_55 = arith.constant 0 : index
    %c0_56 = arith.constant 0 : index
    %97 = vector.load %arg7[%c1_54, %c0_55, %c0_56] : memref<2x32x1xf32, #tpu.memory_space<vmem>>, vector<1x32x1xf32>
    %98 = vector.shape_cast %97 : vector<1x32x1xf32> to vector<32x1xf32>
    %99 = vector.shape_cast %70 : vector<32x1xf32> to vector<1x32x1xf32>
    tpu.vector_store %arg7[%c1_54, %c0_55, %c0_56], %99 {strides = array<i32>} : memref<2x32x1xf32, #tpu.memory_space<vmem>>, vector<1x32x1xf32>,
    %c0_i32_57 = arith.constant 0 : i32
    %100 = arith.cmpi eq, %arg1, %c0_i32_57 : i32
    %101 = arith.extui %100 : i1 to i32
    %c0_i32_58 = arith.constant 0 : i32
    %102 = arith.cmpi ne, %101, %c0_i32_58 : i32
    scf.if %102 {
      %c0_59 = arith.constant 0 : index
      %c0_60 = arith.constant 0 : index
      %c0_61 = arith.constant 0 : index
      %103 = vector.load %arg7[%c0_59, %c0_60, %c0_61] : memref<2x32x1xf32, #tpu.memory_space<vmem>>, vector<1x32x1xf32>
      %104 = vector.shape_cast %103 : vector<1x32x1xf32> to vector<32x1xf32>
      %cst_62 = arith.constant -1.000000e+20 : f32
      %105 = vector.broadcast %cst_62 : f32 to vector<32x1xf32>
      %106 = arith.cmpf ogt, %104, %105 : vector<32x1xf32>
      %107 = arith.extui %106 : vector<32x1xi1> to vector<32x1xi32>
      %108 = arith.sitofp %107 : vector<32x1xi32> to vector<32x1xf32>
      %c0_63 = arith.constant 0 : index
      %c0_64 = arith.constant 0 : index
      %c0_65 = arith.constant 0 : index
      %109 = vector.load %arg8[%c0_63, %c0_64, %c0_65] : memref<2x32x1xf32, #tpu.memory_space<vmem>>, vector<1x32x1xf32>
      %110 = vector.shape_cast %109 : vector<1x32x1xf32> to vector<32x1xf32>
      %cst_66 = arith.constant 1.000000e-16 : f32
      %111 = vector.broadcast %cst_66 : f32 to vector<32x1xf32>
      %112 = arith.maximumf %110, %111 : vector<32x1xf32>
      %113 = tpu.reciprocal %112 {approx = true} : vector<32x1xf32> -> vector<32x1xf32>
      %114 = arith.mulf %113, %108 : vector<32x1xf32>
      %c0_67 = arith.constant 0 : index
      %c0_68 = arith.constant 0 : index
      %c0_69 = arith.constant 0 : index
      %115 = vector.load %arg9[%c0_67, %c0_68, %c0_69] : memref<2x32x8xf32, #tpu.memory_space<vmem>>, vector<1x32x8xf32>
      %116 = vector.shape_cast %115 : vector<1x32x8xf32> to vector<32x8xf32>
      %117 = vector.broadcast %114 : vector<32x1xf32> to vector<32x8xf32>
      %118 = arith.mulf %116, %117 : vector<32x8xf32>
      %c0_70 = arith.constant 0 : index
      %c0_71 = arith.constant 0 : index
      %119 = vector.load %arg6[%c0_70, %c0_71] : memref<32x16xf32, #tpu.memory_space<vmem>>, vector<32x8xf32>
      tpu.vector_store %arg6[%c0_70, %c0_71], %118 {strides = array<i32>} : memref<32x16xf32, #tpu.memory_space<vmem>>, vector<32x8xf32>,
      %c1_72 = arith.constant 1 : index
      %c0_73 = arith.constant 0 : index
      %c0_74 = arith.constant 0 : index
      %120 = vector.load %arg7[%c1_72, %c0_73, %c0_74] : memref<2x32x1xf32, #tpu.memory_space<vmem>>, vector<1x32x1xf32>
      %121 = vector.shape_cast %120 : vector<1x32x1xf32> to vector<32x1xf32>
      %cst_75 = arith.constant -1.000000e+20 : f32
      %122 = vector.broadcast %cst_75 : f32 to vector<32x1xf32>
      %123 = arith.cmpf ogt, %121, %122 : vector<32x1xf32>
      %124 = arith.extui %123 : vector<32x1xi1> to vector<32x1xi32>
      %125 = arith.sitofp %124 : vector<32x1xi32> to vector<32x1xf32>
      %c1_76 = arith.constant 1 : index
      %c0_77 = arith.constant 0 : index
      %c0_78 = arith.constant 0 : index
      %126 = vector.load %arg8[%c1_76, %c0_77, %c0_78] : memref<2x32x1xf32, #tpu.memory_space<vmem>>, vector<1x32x1xf32>
      %127 = vector.shape_cast %126 : vector<1x32x1xf32> to vector<32x1xf32>
      %cst_79 = arith.constant 1.000000e-16 : f32
      %128 = vector.broadcast %cst_79 : f32 to vector<32x1xf32>
      %129 = arith.maximumf %127, %128 : vector<32x1xf32>
      %130 = tpu.reciprocal %129 {approx = true} : vector<32x1xf32> -> vector<32x1xf32>
      %131 = arith.mulf %130, %125 : vector<32x1xf32>
      %c1_80 = arith.constant 1 : index
      %c0_81 = arith.constant 0 : index
      %c0_82 = arith.constant 0 : index
      %132 = vector.load %arg9[%c1_80, %c0_81, %c0_82] : memref<2x32x8xf32, #tpu.memory_space<vmem>>, vector<1x32x8xf32>
      %133 = vector.shape_cast %132 : vector<1x32x8xf32> to vector<32x8xf32>
      %134 = vector.broadcast %131 : vector<32x1xf32> to vector<32x8xf32>
      %135 = arith.mulf %133, %134 : vector<32x8xf32>
      %c0_83 = arith.constant 0 : index
      %c8_84 = arith.constant 8 : index
      %136 = vector.load %arg6[%c0_83, %c8_84] : memref<32x16xf32, #tpu.memory_space<vmem>>, vector<32x8xf32>
      tpu.vector_store %arg6[%c0_83, %c8_84], %135 {strides = array<i32>} : memref<32x16xf32, #tpu.memory_space<vmem>>, vector<32x8xf32>,
    } else {
    }
    return
  }
  func.func @transform_0(%arg0: i32, %arg1: i32) -> (i32, i32) {
    %c0_i32 = arith.constant 0 : i32
    %c0_i32_0 = arith.constant 0 : i32
    return %arg0, %c0_i32 : i32, i32
  }
  func.func @transform_1(%arg0: i32, %arg1: i32) -> (i32, i32) {
    %c0_i32 = arith.constant 0 : i32
    %c0_i32_0 = arith.constant 0 : i32
    return %c0_i32, %arg1 : i32, i32
  }
  func.func @transform_2(%arg0: i32, %arg1: i32) -> (i32, i32) {
    %c0_i32 = arith.constant 0 : i32
    return %arg0, %arg1 : i32, i32
  }
  func.func @transform_3(%arg0: i32, %arg1: i32) -> (i32, i32) {
    %c0_i32 = arith.constant 0 : i32
    %c0_i32_0 = arith.constant 0 : i32
    %c0_i32_1 = arith.constant 0 : i32
    return %c0_i32, %c0_i32_0 : i32, i32
  }
  func.func @transform_4(%arg0: i32, %arg1: i32) -> (i32, i32) {
    %c0_i32 = arith.constant 0 : i32
    %c0_i32_0 = arith.constant 0 : i32
    return %arg0, %c0_i32 : i32, i32
  }
}

</mosaic_0001>

<llo_original>
// kernel: gat_forward.1
$region0: #{gat_forward.1}
  #allocation0 [shape = 'u32[]', space=smem, size = 0x4, offset = 0x4, fixed_abs, tag = 'smem constant byte address 0x4 - core index']
  #allocation1 [shape = 'u32[72,128]{1,0:T(1,128)}', space=vmem, size = 0x9000, scoped, tag = 'internal scratch']
  #allocation2 [shape = 'f32[2,32,1]{2,1,0:T(8,128)}', space=vmem, size = 0x8000, scoped, tag = 'scratch operand']
  #allocation3 [shape = 'f32[2,32,1]{2,1,0:T(8,128)}', space=vmem, size = 0x8000, scoped, tag = 'scratch operand']
  #allocation4 [shape = 'f32[2,32,8]{2,1,0:T(8,128)}', space=vmem, size = 0x8000, scoped, tag = 'scratch operand']
  %s0 = inlined_call_operand.vmem [shape: f32[128,2], index: 0, kind: input, shape index: {}]
  %s1 = inlined_call_operand.vmem [shape: f32[2,128], index: 1, kind: input, shape index: {}]
  %s2 = inlined_call_operand.vmem [shape: s8[128,128], index: 2, kind: input, shape index: {}]
  %s3 = inlined_call_operand.vmem [shape: bf16[128,16], index: 3, kind: input, shape index: {}]
  %s4 = inlined_call_operand.vmem [shape: f32[128,16], index: 4, kind: output, shape index: {}]
  %s5 = sld [smem:[#allocation0]]
  $region57: #{gat_forward.1} parent=0
    _
  %s7 = ssub.s32 1, %s5
  %s8 = scalar_select 0, %s7, %s5
  loop: start=0, step=1, limit=6
  $region2: #{gat_forward.1} parent=0 // loop_pre_header
    _
  $region3: #{gat_forward.1} parent=0 // loop_header
    %s10 = sphi 0, %s14
    %p11 = scmp.ge.s32.totalorder %s10, 6
    %s17 = sphi 0, %s29
    %s18 = sphi 0, %s25
    %s19 = sphi 0, %s17
    %s20 = sphi 0, %s18
    %s21 = sphi 0, %s19
    %s22 = sphi 0, %s20
    %s32 = sphi 0, %s34
    %s35 = sphi 0, %s32
    %s36 = sphi 0, %s35
    %s52 = sphi 0, %s36
    %s58 = sphi 0, %s60
    %s61 = sphi 0, %s58
    %s62 = sphi 0, %s61
    %s78 = sphi 0, %s62
    %s86 = sphi 0, %s88
    %s89 = sphi 0, %s86
    %s90 = sphi 0, %s89
    %s106 = sphi 0, %s90
    %s110 = sphi 0, %s110
    %s112 = sphi 0, %s110
    %s113 = sphi 0, %s112
    %s127 = sphi 0, %s113
    %s133 = sphi 0, %s135
    %s136 = sphi 0, %s133
    %s137 = sphi 0, %s136
    %s153 = sphi 0, %s137
  $region4: #{gat_forward.1} parent=0 // loop_header_branch
    %13 = sbr.rel (%p11) target = $region8
  $region5: #{gat_forward.1} parent=0 // loop_body
    %s15 = ssub.s32 %s10, 1
    %s16 = ssub.s32 %s10, 2
    %s23 = sadd.s32 1, %s18
    %p24 = scmp.ge.s32.totalorder %s23, 1
    %s25 = scalar_select %p24, 0, %s23
    %s26 = sadd.s32 1, %s17
    %s27 = scalar_select %p24, %s26, %s17
    %p28 = scmp.ge.s32.totalorder %s27, 4
    %s29 = scalar_select %p28, 0, %s27
    %s30 = ssub.s32 %s17, %s29
    %p31 = scmp.eq.s32.totalorder %s30, 0
    %s33 = sadd.s32 %s32, 1
    %s34 = scalar_select %p31, %s32, %s33
    %p37 = pneg %p31
    %p38 = scmp.eq.s32.totalorder %s10, 3
    %p39 = por %p37, %p38
    %p40 = scmp.ne.s32.totalorder %s32, %s35
    %p41 = scmp.eq.s32.totalorder %s10, 0
    %p42 = por %p40, %p41
    %p43 = scmp.ne.s32.totalorder %s32, %s35
    %p44 = scmp.eq.s32.totalorder %s15, 3
    %p45 = por %p43, %p44
    %p46 = scmp.ne.s32.totalorder %s35, %s36
    %p47 = scmp.eq.s32.totalorder %s15, 0
    %p48 = por %p46, %p47
    %p49 = scmp.ne.s32.totalorder %s35, %s36
    %p50 = scmp.eq.s32.totalorder %s16, 3
    %p51 = por %p49, %p50
    %p53 = scmp.ne.s32.totalorder %s36, %s52
    %p54 = scmp.eq.s32.totalorder %s16, 0
    %p55 = por %p53, %p54
    %s56 = ssub.s32 %s18, %s25
    %p57 = scmp.eq.s32.totalorder %s56, 0
    %s59 = sadd.s32 %s58, 1
    %s60 = scalar_select %p57, %s58, %s59
    %p63 = pneg %p57
    %p64 = scmp.eq.s32.totalorder %s10, 3
    %p65 = por %p63, %p64
    %p66 = scmp.ne.s32.totalorder %s58, %s61
    %p67 = scmp.eq.s32.totalorder %s10, 0
    %p68 = por %p66, %p67
    %p69 = scmp.ne.s32.totalorder %s58, %s61
    %p70 = scmp.eq.s32.totalorder %s15, 3
    %p71 = por %p69, %p70
    %p72 = scmp.ne.s32.totalorder %s61, %s62
    %p73 = scmp.eq.s32.totalorder %s15, 0
    %p74 = por %p72, %p73
    %p75 = scmp.ne.s32.totalorder %s61, %s62
    %p76 = scmp.eq.s32.totalorder %s16, 3
    %p77 = por %p75, %p76
    %p79 = scmp.ne.s32.totalorder %s62, %s78
    %p80 = scmp.eq.s32.totalorder %s16, 0
    %p81 = por %p79, %p80
    %s82 = ssub.s32 %s17, %s29
    %s83 = ssub.s32 %s18, %s25
    %s84 = sor.u32 %s82, %s83
    %p85 = scmp.eq.s32.totalorder %s84, 0
    %s87 = sadd.s32 %s86, 1
    %s88 = scalar_select %p85, %s86, %s87
    %p91 = pneg %p85
    %p92 = scmp.eq.s32.totalorder %s10, 3
    %p93 = por %p91, %p92
    %p94 = scmp.ne.s32.totalorder %s86, %s89
    %p95 = scmp.eq.s32.totalorder %s10, 0
    %p96 = por %p94, %p95
    %p97 = scmp.ne.s32.totalorder %s86, %s89
    %p98 = scmp.eq.s32.totalorder %s15, 3
    %p99 = por %p97, %p98
    %p100 = scmp.ne.s32.totalorder %s89, %s90
    %p101 = scmp.eq.s32.totalorder %s15, 0
    %p102 = por %p100, %p101
    %p103 = scmp.ne.s32.totalorder %s89, %s90
    %p104 = scmp.eq.s32.totalorder %s16, 3
    %p105 = por %p103, %p104
    %p107 = scmp.ne.s32.totalorder %s90, %s106
    %p108 = scmp.eq.s32.totalorder %s16, 0
    %p109 = por %p107, %p108
    %s111 = sadd.s32 %s110, 1
    %p114 = scmp.eq.s32.totalorder %s10, 3
    %p115 = scmp.ne.s32.totalorder %s110, %s112
    %p116 = scmp.eq.s32.totalorder %s10, 0
    %p117 = por %p115, %p116
    %p118 = scmp.ne.s32.totalorder %s110, %s112
    %p119 = scmp.eq.s32.totalorder %s15, 3
    %p120 = por %p118, %p119
    %p121 = scmp.ne.s32.totalorder %s112, %s113
    %p122 = scmp.eq.s32.totalorder %s15, 0
    %p123 = por %p121, %p122
    %p124 = scmp.ne.s32.totalorder %s112, %s113
    %p125 = scmp.eq.s32.totalorder %s16, 3
    %p126 = por %p124, %p125
    %p128 = scmp.ne.s32.totalorder %s113, %s127
    %p129 = scmp.eq.s32.totalorder %s16, 0
    %p130 = por %p128, %p129
    %s131 = ssub.s32 %s17, %s29
    %p132 = scmp.eq.s32.totalorder %s131, 0
    %s134 = sadd.s32 %s133, 1
    %s135 = scalar_select %p132, %s133, %s134
    %p138 = pneg %p132
    %p139 = scmp.eq.s32.totalorder %s10, 3
    %p140 = por %p138, %p139
    %p141 = scmp.ne.s32.totalorder %s133, %s136
    %p142 = scmp.eq.s32.totalorder %s10, 0
    %p143 = por %p141, %p142
    %p144 = scmp.ne.s32.totalorder %s133, %s136
    %p145 = scmp.eq.s32.totalorder %s15, 3
    %p146 = por %p144, %p145
    %p147 = scmp.ne.s32.totalorder %s136, %s137
    %p148 = scmp.eq.s32.totalorder %s15, 0
    %p149 = por %p147, %p148
    %p150 = scmp.ne.s32.totalorder %s136, %s137
    %p151 = scmp.eq.s32.totalorder %s16, 3
    %p152 = por %p150, %p151
    %p154 = scmp.ne.s32.totalorder %s137, %s153
    %p155 = scmp.eq.s32.totalorder %s16, 0
    %p156 = por %p154, %p155
    %p157 = scmp.le.s32.totalorder 1, %s10
    %p158 = scmp.lt.s32.totalorder %s10, 5
    %p159 = pnand %p157, %p158
    %p160 = pneg %p159
    // Predicated region
    $region9: #{gat_forward.1} parent=5 // pred_check
      _
    $region10: #{gat_forward.1} parent=5 // pred_check_branch
      %162 = sbr.rel (%p159) target = $region12
    $region11: #{gat_forward.1} parent=5 // pred_region
      %s163 = ssub.s32 %s10, 1
      // Predicated region
      $region13: #{gat_forward.1} parent=11 // pred_check
        %p164 = pneg %p74
      $region14: #{gat_forward.1} parent=11 // pred_check_branch
        %166 = sbr.rel (%p164) target = $region16
      $region15: #{gat_forward.1} parent=11 // pred_region
        %p167 = scmp.lt.s32.totalorder %s20, 0
        %s168 = scalar_select %p167, %s20, 0
        %s169 = smul.addr %s168, 2
        %s170 = scalar_lea.vmem %s1, %s169
      $region16: #{gat_forward.1} parent=11 // pred_fallthru
        _
      // Predicated region
      $region17: #{gat_forward.1} parent=11 // pred_check
        %p171 = pneg %p123
      $region18: #{gat_forward.1} parent=11 // pred_check_branch
        %173 = sbr.rel (%p171) target = $region20
      $region19: #{gat_forward.1} parent=11 // pred_region
        _
      $region20: #{gat_forward.1} parent=11 // pred_fallthru
        _
    $region12: #{gat_forward.1} parent=5 // pred_fallthru
      _
    %p174 = scmp.lt.s32.totalorder %s10, 4
    // Predicated region
    $region21: #{gat_forward.1} parent=5 // pred_check
      %p175 = pneg %p174
    $region22: #{gat_forward.1} parent=5 // pred_check_branch
      %177 = sbr.rel (%p175) target = $region24
    $region23: #{gat_forward.1} parent=5 // pred_region
      // Predicated region
      $region25: #{gat_forward.1} parent=23 // pred_check
        %p178 = pneg %p42
      $region26: #{gat_forward.1} parent=23 // pred_check_branch
        %180 = sbr.rel (%p178) target = $region28
      $region27: #{gat_forward.1} parent=23 // pred_region
        %s181 = smul.u32 4, %s17
        %p182 = scmp.lt.s32.totalorder %s181, 15
        %s183 = scalar_select %p182, %s181, 15
        %s184 = smul.addr %s183, 8
        %s185 = scalar_lea.vmem %s0, %s184
        %s186 = smul.u32 4, %s17
      $region28: #{gat_forward.1} parent=23 // pred_fallthru
        _
      // Predicated region
      $region29: #{gat_forward.1} parent=23 // pred_check
        %p187 = pneg %p96
      $region30: #{gat_forward.1} parent=23 // pred_check_branch
        %189 = sbr.rel (%p187) target = $region32
      $region31: #{gat_forward.1} parent=23 // pred_region
        %s190 = smul.u32 4, %s17
        %p191 = scmp.lt.s32.totalorder %s190, 15
        %s192 = scalar_select %p191, %s190, 15
        %p193 = scmp.lt.s32.totalorder %s18, 0
        %s194 = scalar_select %p193, %s18, 0
        %s195 = sadd.s32 %s194, %s192
        %s196 = smul.addr %s195, 2
        %s197 = scalar_lea.vmem %s2, %s196
        %s198 = smul.u32 4, %s17
      $region32: #{gat_forward.1} parent=23 // pred_fallthru
        _
    $region24: #{gat_forward.1} parent=5 // pred_fallthru
      _
    %p199 = scmp.le.s32.totalorder 1, %s10
    %p200 = scmp.lt.s32.totalorder %s10, 5
    %p201 = pnand %p199, %p200
    %p202 = pneg %p201
    // Predicated region
    $region33: #{gat_forward.1} parent=5 // pred_check
      _
    $region34: #{gat_forward.1} parent=5 // pred_check_branch
      %204 = sbr.rel (%p201) target = $region36
    $region35: #{gat_forward.1} parent=5 // pred_region
      %s205 = ssub.s32 %s10, 1
      %s206 = smul.u32 4, %s19
      %p207 = scmp.lt.s32.totalorder %s206, 15
      %s208 = scalar_select %p207, %s206, 15
      %s209 = smul.addr %s208, 8
      %s210 = scalar_lea.vmem %s0, %s209
      %p211 = pneg %p48
      %p212 = pneg %p45
      %p213 = scmp.lt.s32.totalorder %s20, 0
      %s214 = scalar_select %p213, %s20, 0
      %s215 = smul.addr %s214, 2
      %s216 = scalar_lea.vmem %s1, %s215
      %p217 = pneg %p74
      %p218 = pneg %p71
      %s219 = smul.u32 4, %s19
      %p220 = scmp.lt.s32.totalorder %s219, 15
      %s221 = scalar_select %p220, %s219, 15
      %p222 = scmp.lt.s32.totalorder %s20, 0
      %s223 = scalar_select %p222, %s20, 0
      %s224 = sadd.s32 %s223, %s221
      %s225 = smul.addr %s224, 2
      %s226 = scalar_lea.vmem %s2, %s225
      %p227 = pneg %p102
      %p228 = pneg %p99
      %p229 = pneg %p123
      %p230 = pneg %p120
      %p231 = pneg %p149
      %p232 = pneg %p146
      %s233 = smul.u32 4, %s19
      %p234 = scmp.lt.s32.totalorder %s233, 15
      %s235 = scalar_select %p234, %s233, 15
      %s236 = smul.addr %s235, 8
      %s237 = scalar_lea.vmem %s4, %s236
      %s238 = smul.u32 4, %s19
      %p239 = scmp.lt.s32.totalorder %s238, 15
      %s240 = scalar_select %p239, %s238, 15
      %s241 = smul.addr %s240, 8
      %s242 = scalar_lea.vmem %s0, %s241
      %s243 = smul.u32 4, %s19
      %p244 = scmp.lt.s32.totalorder %s20, 0
      %s245 = scalar_select %p244, %s20, 0
      %s246 = smul.addr %s245, 2
      %s247 = scalar_lea.vmem %s1, %s246
      %s248 = smul.u32 4, %s19
      %p249 = scmp.lt.s32.totalorder %s248, 15
      %s250 = scalar_select %p249, %s248, 15
      %p251 = scmp.lt.s32.totalorder %s20, 0
      %s252 = scalar_select %p251, %s20, 0
      %s253 = sadd.s32 %s252, %s250
      %s254 = smul.addr %s253, 2
      %s255 = scalar_lea.vmem %s2, %s254
      %s256 = smul.u32 4, %s19
      %s257 = smul.u32 4, %s19
      %p258 = scmp.lt.s32.totalorder %s257, 15
      %s259 = scalar_select %p258, %s257, 15
      %s260 = smul.addr %s259, 8
      %s261 = scalar_lea.vmem %s4, %s260
      %s262 = smul.u32 4, %s19
      %p265 = scmp.eq.s32.totalorder %s20, 0
      // Predicated region
      $region37: #{gat_forward.1} parent=35 // pred_check
        %p266 = pneg %p265
      $region38: #{gat_forward.1} parent=35 // pred_check_branch
        %268 = sbr.rel (%p266) target = $region40
      $region39: #{gat_forward.1} parent=35 // pred_region
        %vm269 = vcmask 7168
        %270 = vst.msk [vmem:[#allocation2] sm:$0xff] %vm269, -1e+30
        %271 = vst.msk [vmem:[#allocation2 + $0x8] sm:$0xff] %vm269, -1e+30
        %272 = vst.msk [vmem:[#allocation2 + $0x10] sm:$0xff] %vm269, -1e+30
        %273 = vst.msk [vmem:[#allocation2 + $0x18] sm:$0xff] %vm269, -1e+30
        %274 = vst.msk [vmem:[#allocation2 + $0x20] sm:$0xff] %vm269, -1e+30
        %275 = vst.msk [vmem:[#allocation2 + $0x28] sm:$0xff] %vm269, -1e+30
        %276 = vst.msk [vmem:[#allocation2 + $0x30] sm:$0xff] %vm269, -1e+30
        %277 = vst.msk [vmem:[#allocation2 + $0x38] sm:$0xff] %vm269, -1e+30
        %278 = vst.msk [vmem:[#allocation3] sm:$0xff] %vm269, 0.0
        %279 = vst.msk [vmem:[#allocation3 + $0x8] sm:$0xff] %vm269, 0.0
        %280 = vst.msk [vmem:[#allocation3 + $0x10] sm:$0xff] %vm269, 0.0
        %281 = vst.msk [vmem:[#allocation3 + $0x18] sm:$0xff] %vm269, 0.0
        %282 = vst.msk [vmem:[#allocation3 + $0x20] sm:$0xff] %vm269, 0.0
        %283 = vst.msk [vmem:[#allocation3 + $0x28] sm:$0xff] %vm269, 0.0
        %284 = vst.msk [vmem:[#allocation3 + $0x30] sm:$0xff] %vm269, 0.0
        %285 = vst.msk [vmem:[#allocation3 + $0x38] sm:$0xff] %vm269, 0.0
        %vm286 = vcmask 64512
        %287 = vst.msk [vmem:[#allocation4] sm:$0xff] %vm286, 0.0
        %288 = vst.msk [vmem:[#allocation4 + $0x8] sm:$0xff] %vm286, 0.0
        %289 = vst.msk [vmem:[#allocation4 + $0x10] sm:$0xff] %vm286, 0.0
        %290 = vst.msk [vmem:[#allocation4 + $0x18] sm:$0xff] %vm286, 0.0
        %291 = vst.msk [vmem:[#allocation4 + $0x20] sm:$0xff] %vm286, 0.0
        %292 = vst.msk [vmem:[#allocation4 + $0x28] sm:$0xff] %vm286, 0.0
        %293 = vst.msk [vmem:[#allocation4 + $0x30] sm:$0xff] %vm286, 0.0
        %294 = vst.msk [vmem:[#allocation4 + $0x38] sm:$0xff] %vm286, 0.0
      $region40: #{gat_forward.1} parent=35 // pred_fallthru
        _
      %v295 = vld [vmem:[%s255] sm:$0x3]
      %v296 = vld [vmem:[%s255 + $0x2] sm:$0x3]
      %v297 = vld [vmem:[%s255 + $0x4] sm:$0x3]
      %v298 = vld [vmem:[%s255 + $0x6] sm:$0x3]
      %vm299 = vnez %v295
      %vm300 = vnez %v296
      %vm301 = vnez %v297
      %vm302 = vnez %v298
      %s303 = smul.u32 %s20, 128
      %v304 = vld [vmem:[%s242] sm:$0xff]
      %v305 = vld [vmem:[%s242 + $0x8] sm:$0xff]
      %v306 = vld [vmem:[%s242 + $0x10] sm:$0xff]
      %v307 = vld [vmem:[%s242 + $0x18] sm:$0xff]
      %v308 = vld [vmem:[%s247] sm:$0x1]
      %310 = vset.pattern.permute.xlu0 0
      %311 = vperm.xlu0 %310, %v304
      %v312 = vpop.permute.xlu0 %311
      %315 = vset.pattern.permute.xlu0 0
      %316 = vperm.xlu0 %315, %v305
      %v317 = vpop.permute.xlu0 %316
      %320 = vset.pattern.permute.xlu0 0
      %321 = vperm.xlu0 %320, %v306
      %v322 = vpop.permute.xlu0 %321
      %325 = vset.pattern.permute.xlu0 0
      %326 = vperm.xlu0 %325, %v307
      %v327 = vpop.permute.xlu0 %326
      %v329 = vperm.slane %v308, 0
      %v330 = vadd.f32 %v312, %v329
      %v331 = vadd.f32 %v317, %v329
      %v332 = vadd.f32 %v322, %v329
      %v333 = vadd.f32 %v327, %v329
      %vm334 = vcmp.gt.f32.partialorder %v330, 0.0
      %vm335 = vcmp.gt.f32.partialorder %v331, 0.0
      %vm336 = vcmp.gt.f32.partialorder %v332, 0.0
      %vm337 = vcmp.gt.f32.partialorder %v333, 0.0
      %v338 = vmul.f32 %v330, 0.2
      %v339 = vmul.f32 %v331, 0.2
      %v340 = vmul.f32 %v332, 0.2
      %v341 = vmul.f32 %v333, 0.2
      %v342 = vsel %vm334, %v330, %v338
      %v343 = vsel %vm335, %v331, %v339
      %v344 = vsel %vm336, %v332, %v340
      %v345 = vsel %vm337, %v333, %v341
      %v346 = vsel %vm299, 16843009, 0
      %v347 = vsel %vm300, 16843009, 0
      %v348 = vsel %vm301, 16843009, 0
      %v349 = vsel %vm302, 16843009, 0
      %v350 = vunpack.c.0.s8 %v346
      %v351 = vunpack.c.0.s8 %v347
      %v352 = vunpack.c.0.s8 %v348
      %v353 = vunpack.c.0.s8 %v349
      %vm354 = vcmp.ne.s32.totalorder %v350, 0
      %vm355 = vcmp.ne.s32.totalorder %v351, 0
      %vm356 = vcmp.ne.s32.totalorder %v352, 0
      %vm357 = vcmp.ne.s32.totalorder %v353, 0
      %v358 = vsel %vm354, %v342, -1e+30
      %v359 = vsel %vm355, %v343, -1e+30
      %v360 = vsel %vm356, %v344, -1e+30
      %v361 = vsel %vm357, %v345, -1e+30
      %v362 = vld [vmem:[#allocation2] sm:$0xff]
      %v363 = vld [vmem:[#allocation2 + $0x8] sm:$0xff]
      %v364 = vld [vmem:[#allocation2 + $0x10] sm:$0xff]
      %v365 = vld [vmem:[#allocation2 + $0x18] sm:$0xff]
      %366 = vmax.xlane.f32.xlu0 %v358
      %v367 = vpop.xlane.xlu0 %366
      %368 = vmax.xlane.f32.xlu0 %v359
      %v369 = vpop.xlane.xlu0 %368
      %370 = vmax.xlane.f32.xlu0 %v360
      %v371 = vpop.xlane.xlu0 %370
      %372 = vmax.xlane.f32.xlu0 %v361
      %v373 = vpop.xlane.xlu0 %372
      %v374 = vmax.f32 %v362, %v367
      %v375 = vmax.f32 %v363, %v369
      %v376 = vmax.f32 %v364, %v371
      %v377 = vmax.f32 %v365, %v373
      %v378 = vsub.f32 %v362, %v374
      %v379 = vsub.f32 %v363, %v375
      %v380 = vsub.f32 %v364, %v376
      %v381 = vsub.f32 %v365, %v377
      %v382 = vmul.f32 %v378, 1.442695
      %v383 = vpow.pop %v382
      %v384 = vmul.f32 %v379, 1.442695
      %v385 = vpow.pop %v384
      %v386 = vmul.f32 %v380, 1.442695
      %v387 = vpow.pop %v386
      %v388 = vmul.f32 %v381, 1.442695
      %v389 = vpow.pop %v388
      %391 = vset.pattern.permute.xlu0 0
      %392 = vperm.xlu0 %391, %v374
      %v393 = vpop.permute.xlu0 %392
      %396 = vset.pattern.permute.xlu0 0
      %397 = vperm.xlu0 %396, %v375
      %v398 = vpop.permute.xlu0 %397
      %401 = vset.pattern.permute.xlu0 0
      %402 = vperm.xlu0 %401, %v376
      %v403 = vpop.permute.xlu0 %402
      %406 = vset.pattern.permute.xlu0 0
      %407 = vperm.xlu0 %406, %v377
      %v408 = vpop.permute.xlu0 %407
      %v410 = vsub.f32 %v358, %v393
      %v411 = vsub.f32 %v359, %v398
      %v412 = vsub.f32 %v360, %v403
      %v413 = vsub.f32 %v361, %v408
      %v414 = vmul.f32 %v410, 1.442695
      %v415 = vpow.pop %v414
      %v416 = vmul.f32 %v411, 1.442695
      %v417 = vpow.pop %v416
      %v418 = vmul.f32 %v412, 1.442695
      %v419 = vpow.pop %v418
      %v420 = vmul.f32 %v413, 1.442695
      %v421 = vpow.pop %v420
      %v422 = vld [vmem:[#allocation3] sm:$0xff]
      %v423 = vld [vmem:[#allocation3 + $0x8] sm:$0xff]
      %v424 = vld [vmem:[#allocation3 + $0x10] sm:$0xff]
      %v425 = vld [vmem:[#allocation3 + $0x18] sm:$0xff]
      %v426 = vmul.f32 %v383, %v422
      %v427 = vmul.f32 %v385, %v423
      %v428 = vmul.f32 %v387, %v424
      %v429 = vmul.f32 %v389, %v425
      %430 = vadd.xlane.f32.xlu0 %v415
      %v431 = vpop.xlane.xlu0 %430
      %432 = vadd.xlane.f32.xlu0 %v417
      %v433 = vpop.xlane.xlu0 %432
      %434 = vadd.xlane.f32.xlu0 %v419
      %v435 = vpop.xlane.xlu0 %434
      %436 = vadd.xlane.f32.xlu0 %v421
      %v437 = vpop.xlane.xlu0 %436
      %v438 = vadd.f32 %v426, %v431
      %v439 = vadd.f32 %v427, %v433
      %v440 = vadd.f32 %v428, %v435
      %v441 = vadd.f32 %v429, %v437
      %vm442 = vcmask 7168
      %443 = vst.msk [vmem:[#allocation3] sm:$0xff] %vm442, %v438
      %444 = vst.msk [vmem:[#allocation3 + $0x8] sm:$0xff] %vm442, %v439
      %445 = vst.msk [vmem:[#allocation3 + $0x10] sm:$0xff] %vm442, %v440
      %446 = vst.msk [vmem:[#allocation3 + $0x18] sm:$0xff] %vm442, %v441
      %s447 = sshra.s32 %s303, 3
      %s448 = sand.u32 %s303, 7
      %s449 = smul.addr %s447, 4
      %s450 = scalar_lea.vmem %s3, %s449
      %v451 = vld [vmem:[%s450] sm:$0xf]
      %v452 = vld [vmem:[%s450 + $0x4] sm:$0xf]
      %v453 = vld [vmem:[%s450 + $0x8] sm:$0xf]
      %v454 = vld [vmem:[%s450 + $0xc] sm:$0xf]
      %v455 = vld [vmem:[%s450 + $0x10] sm:$0xf]
      %v456 = vld [vmem:[%s450 + $0x14] sm:$0xf]
      %v457 = vld [vmem:[%s450 + $0x18] sm:$0xf]
      %v458 = vld [vmem:[%s450 + $0x1c] sm:$0xf]
      %v459 = vld [vmem:[%s450 + $0x20] sm:$0xf]
      %v460 = vld [vmem:[%s450 + $0x24] sm:$0xf]
      %v461 = vld [vmem:[%s450 + $0x28] sm:$0xf]
      %v462 = vld [vmem:[%s450 + $0x2c] sm:$0xf]
      %v463 = vld [vmem:[%s450 + $0x30] sm:$0xf]
      %v464 = vld [vmem:[%s450 + $0x34] sm:$0xf]
      %v465 = vld [vmem:[%s450 + $0x38] sm:$0xf]
      %v466 = vld [vmem:[%s450 + $0x3c] sm:$0xf]
      %v467 = vpack.c.bf16 %v417, %v415
      %v468 = vpack.c.bf16 %v421, %v419
      %v485 = vunpack.c.l.b16 %v451
      %v486 = vunpack.c.l.b16 %v452
      %v487 = vunpack.c.l.b16 %v453
      %v488 = vunpack.c.l.b16 %v454
      %v489 = vunpack.c.l.b16 %v455
      %v490 = vunpack.c.l.b16 %v456
      %v491 = vunpack.c.l.b16 %v457
      %v492 = vunpack.c.l.b16 %v458
      %v493 = vunpack.c.l.b16 %v459
      %v494 = vunpack.c.l.b16 %v460
      %v495 = vunpack.c.l.b16 %v461
      %v496 = vunpack.c.l.b16 %v462
      %v497 = vunpack.c.l.b16 %v463
      %v498 = vunpack.c.l.b16 %v464
      %v499 = vunpack.c.l.b16 %v465
      %v500 = vunpack.c.l.b16 %v466
      %v501 = vpack.c.b16 %v486, %v485
      %v502 = vpack.c.b16 %v488, %v487
      %v503 = vpack.c.b16 %v490, %v489
      %v504 = vpack.c.b16 %v492, %v491
      %v505 = vpack.c.b16 %v494, %v493
      %v506 = vpack.c.b16 %v496, %v495
      %v507 = vpack.c.b16 %v498, %v497
      %v508 = vpack.c.b16 %v500, %v499
      %517 = vmatpush.bf16.msra.mxu0 %v508
      %518 = vmatpush.bf16.msra.mxu0 %v507
      %519 = vmatpush.bf16.msra.mxu0 %v506
      %520 = vmatpush.bf16.msra.mxu0 %v505
      %521 = vmatpush.bf16.msra.mxu0 %v504
      %522 = vmatpush.bf16.msra.mxu0 %v503
      %523 = vmatpush.bf16.msra.mxu0 %v502
      %524 = vmatpush.bf16.msra.mxu0 %v501
      %525 = vmatmul.bf16.gmra.mxu0 %v467
      %v526 = vpop.f32.mrf.mxu0
      %v527 = vadd.f32 0.0, %v526
      %v528 = vpop.f32.mrf.mxu0
      %v529 = vadd.f32 0.0, %v528
      %530 = vmatmul.bf16.gmra.mxu0 %v468
      %v531 = vpop.f32.mrf.mxu0
      %v532 = vadd.f32 0.0, %v531
      %v533 = vpop.f32.mrf.mxu0
      %v534 = vadd.f32 0.0, %v533
      %535 = vdwg.mxu0
      %v536 = vld [vmem:[#allocation4] sm:$0xff]
      %v537 = vld [vmem:[#allocation4 + $0x8] sm:$0xff]
      %v538 = vld [vmem:[#allocation4 + $0x10] sm:$0xff]
      %v539 = vld [vmem:[#allocation4 + $0x18] sm:$0xff]
      %541 = vset.pattern.permute.xlu0 0
      %542 = vperm.xlu0 %541, %v383
      %v543 = vpop.permute.xlu0 %542
      %546 = vset.pattern.permute.xlu0 0
      %547 = vperm.xlu0 %546, %v385
      %v548 = vpop.permute.xlu0 %547
      %551 = vset.pattern.permute.xlu0 0
      %552 = vperm.xlu0 %551, %v387
      %v553 = vpop.permute.xlu0 %552
      %556 = vset.pattern.permute.xlu0 0
      %557 = vperm.xlu0 %556, %v389
      %v558 = vpop.permute.xlu0 %557
      %v560 = vmul.f32 %v543, %v536
      %v561 = vmul.f32 %v548, %v537
      %v562 = vmul.f32 %v553, %v538
      %v563 = vmul.f32 %v558, %v539
      %v564 = vadd.f32 %v560, %v527
      %v565 = vadd.f32 %v561, %v529
      %v566 = vadd.f32 %v562, %v532
      %v567 = vadd.f32 %v563, %v534
      %vm568 = vcmask 64512
      %569 = vst.msk [vmem:[#allocation4] sm:$0xff] %vm568, %v564
      %570 = vst.msk [vmem:[#allocation4 + $0x8] sm:$0xff] %vm568, %v565
      %571 = vst.msk [vmem:[#allocation4 + $0x10] sm:$0xff] %vm568, %v566
      %572 = vst.msk [vmem:[#allocation4 + $0x18] sm:$0xff] %vm568, %v567
      %573 = vst.msk [vmem:[#allocation2] sm:$0xff] %vm442, %v374
      %574 = vst.msk [vmem:[#allocation2 + $0x8] sm:$0xff] %vm442, %v375
      %575 = vst.msk [vmem:[#allocation2 + $0x10] sm:$0xff] %vm442, %v376
      %576 = vst.msk [vmem:[#allocation2 + $0x18] sm:$0xff] %vm442, %v377
      %v577 = vld [vmem:[%s242] sm:$0xff]
      %v578 = vld [vmem:[%s242 + $0x8] sm:$0xff]
      %v579 = vld [vmem:[%s242 + $0x10] sm:$0xff]
      %v580 = vld [vmem:[%s242 + $0x18] sm:$0xff]
      %v581 = vld [vmem:[%s247 + $0x1] sm:$0x1]
      %583 = vset.pattern.permute.xlu0 1
      %584 = vperm.xlu0 %583, %v577
      %v585 = vpop.permute.xlu0 %584
      %588 = vset.pattern.permute.xlu0 1
      %589 = vperm.xlu0 %588, %v578
      %v590 = vpop.permute.xlu0 %589
      %593 = vset.pattern.permute.xlu0 1
      %594 = vperm.xlu0 %593, %v579
      %v595 = vpop.permute.xlu0 %594
      %598 = vset.pattern.permute.xlu0 1
      %599 = vperm.xlu0 %598, %v580
      %v600 = vpop.permute.xlu0 %599
      %v602 = vperm.slane %v581, 0
      %v603 = vadd.f32 %v585, %v602
      %v604 = vadd.f32 %v590, %v602
      %v605 = vadd.f32 %v595, %v602
      %v606 = vadd.f32 %v600, %v602
      %vm607 = vcmp.gt.f32.partialorder %v603, 0.0
      %vm608 = vcmp.gt.f32.partialorder %v604, 0.0
      %vm609 = vcmp.gt.f32.partialorder %v605, 0.0
      %vm610 = vcmp.gt.f32.partialorder %v606, 0.0
      %v611 = vmul.f32 %v603, 0.2
      %v612 = vmul.f32 %v604, 0.2
      %v613 = vmul.f32 %v605, 0.2
      %v614 = vmul.f32 %v606, 0.2
      %v615 = vsel %vm607, %v603, %v611
      %v616 = vsel %vm608, %v604, %v612
      %v617 = vsel %vm609, %v605, %v613
      %v618 = vsel %vm610, %v606, %v614
      %v619 = vsel %vm354, %v615, -1e+30
      %v620 = vsel %vm355, %v616, -1e+30
      %v621 = vsel %vm356, %v617, -1e+30
      %v622 = vsel %vm357, %v618, -1e+30
      %s623 = scalar_lea.vmem [#allocation2], 32
      %v624 = vld [vmem:[%s623] sm:$0xff]
      %v625 = vld [vmem:[%s623 + $0x8] sm:$0xff]
      %v626 = vld [vmem:[%s623 + $0x10] sm:$0xff]
      %v627 = vld [vmem:[%s623 + $0x18] sm:$0xff]
      %628 = vmax.xlane.f32.xlu0 %v619
      %v629 = vpop.xlane.xlu0 %628
      %630 = vmax.xlane.f32.xlu0 %v620
      %v631 = vpop.xlane.xlu0 %630
      %632 = vmax.xlane.f32.xlu0 %v621
      %v633 = vpop.xlane.xlu0 %632
      %634 = vmax.xlane.f32.xlu0 %v622
      %v635 = vpop.xlane.xlu0 %634
      %v636 = vmax.f32 %v624, %v629
      %v637 = vmax.f32 %v625, %v631
      %v638 = vmax.f32 %v626, %v633
      %v639 = vmax.f32 %v627, %v635
      %v640 = vsub.f32 %v624, %v636
      %v641 = vsub.f32 %v625, %v637
      %v642 = vsub.f32 %v626, %v638
      %v643 = vsub.f32 %v627, %v639
      %v644 = vmul.f32 %v640, 1.442695
      %v645 = vpow.pop %v644
      %v646 = vmul.f32 %v641, 1.442695
      %v647 = vpow.pop %v646
      %v648 = vmul.f32 %v642, 1.442695
      %v649 = vpow.pop %v648
      %v650 = vmul.f32 %v643, 1.442695
      %v651 = vpow.pop %v650
      %653 = vset.pattern.permute.xlu0 0
      %654 = vperm.xlu0 %653, %v636
      %v655 = vpop.permute.xlu0 %654
      %658 = vset.pattern.permute.xlu0 0
      %659 = vperm.xlu0 %658, %v637
      %v660 = vpop.permute.xlu0 %659
      %663 = vset.pattern.permute.xlu0 0
      %664 = vperm.xlu0 %663, %v638
      %v665 = vpop.permute.xlu0 %664
      %668 = vset.pattern.permute.xlu0 0
      %669 = vperm.xlu0 %668, %v639
      %v670 = vpop.permute.xlu0 %669
      %v672 = vsub.f32 %v619, %v655
      %v673 = vsub.f32 %v620, %v660
      %v674 = vsub.f32 %v621, %v665
      %v675 = vsub.f32 %v622, %v670
      %v676 = vmul.f32 %v672, 1.442695
      %v677 = vpow.pop %v676
      %v678 = vmul.f32 %v673, 1.442695
      %v679 = vpow.pop %v678
      %v680 = vmul.f32 %v674, 1.442695
      %v681 = vpow.pop %v680
      %v682 = vmul.f32 %v675, 1.442695
      %v683 = vpow.pop %v682
      %s684 = scalar_lea.vmem [#allocation3], 32
      %v685 = vld [vmem:[%s684] sm:$0xff]
      %v686 = vld [vmem:[%s684 + $0x8] sm:$0xff]
      %v687 = vld [vmem:[%s684 + $0x10] sm:$0xff]
      %v688 = vld [vmem:[%s684 + $0x18] sm:$0xff]
      %v689 = vmul.f32 %v645, %v685
      %v690 = vmul.f32 %v647, %v686
      %v691 = vmul.f32 %v649, %v687
      %v692 = vmul.f32 %v651, %v688
      %693 = vadd.xlane.f32.xlu0 %v677
      %v694 = vpop.xlane.xlu0 %693
      %695 = vadd.xlane.f32.xlu0 %v679
      %v696 = vpop.xlane.xlu0 %695
      %697 = vadd.xlane.f32.xlu0 %v681
      %v698 = vpop.xlane.xlu0 %697
      %699 = vadd.xlane.f32.xlu0 %v683
      %v700 = vpop.xlane.xlu0 %699
      %v701 = vadd.f32 %v689, %v694
      %v702 = vadd.f32 %v690, %v696
      %v703 = vadd.f32 %v691, %v698
      %v704 = vadd.f32 %v692, %v700
      %705 = vst.msk [vmem:[%s684] sm:$0xff] %vm442, %v701
      %706 = vst.msk [vmem:[%s684 + $0x8] sm:$0xff] %vm442, %v702
      %707 = vst.msk [vmem:[%s684 + $0x10] sm:$0xff] %vm442, %v703
      %708 = vst.msk [vmem:[%s684 + $0x18] sm:$0xff] %vm442, %v704
      %v709 = vld [vmem:[%s450] sm:$0xf]
      %v710 = vld [vmem:[%s450 + $0x4] sm:$0xf]
      %v711 = vld [vmem:[%s450 + $0x8] sm:$0xf]
      %v712 = vld [vmem:[%s450 + $0xc] sm:$0xf]
      %v713 = vld [vmem:[%s450 + $0x10] sm:$0xf]
      %v714 = vld [vmem:[%s450 + $0x14] sm:$0xf]
      %v715 = vld [vmem:[%s450 + $0x18] sm:$0xf]
      %v716 = vld [vmem:[%s450 + $0x1c] sm:$0xf]
      %v717 = vld [vmem:[%s450 + $0x20] sm:$0xf]
      %v718 = vld [vmem:[%s450 + $0x24] sm:$0xf]
      %v719 = vld [vmem:[%s450 + $0x28] sm:$0xf]
      %v720 = vld [vmem:[%s450 + $0x2c] sm:$0xf]
      %v721 = vld [vmem:[%s450 + $0x30] sm:$0xf]
      %v722 = vld [vmem:[%s450 + $0x34] sm:$0xf]
      %v723 = vld [vmem:[%s450 + $0x38] sm:$0xf]
      %v724 = vld [vmem:[%s450 + $0x3c] sm:$0xf]
      %v725 = vpack.c.bf16 %v679, %v677
      %v726 = vpack.c.bf16 %v683, %v681
      %v743 = vunpack.c.l.b16 %v709
      %v744 = vunpack.c.l.b16 %v710
      %v745 = vunpack.c.l.b16 %v711
      %v746 = vunpack.c.l.b16 %v712
      %v747 = vunpack.c.l.b16 %v713
      %v748 = vunpack.c.l.b16 %v714
      %v749 = vunpack.c.l.b16 %v715
      %v750 = vunpack.c.l.b16 %v716
      %v751 = vunpack.c.l.b16 %v717
      %v752 = vunpack.c.l.b16 %v718
      %v753 = vunpack.c.l.b16 %v719
      %v754 = vunpack.c.l.b16 %v720
      %v755 = vunpack.c.l.b16 %v721
      %v756 = vunpack.c.l.b16 %v722
      %v757 = vunpack.c.l.b16 %v723
      %v758 = vunpack.c.l.b16 %v724
      %v759 = vpack.c.b16 %v744, %v743
      %v760 = vpack.c.b16 %v746, %v745
      %v761 = vpack.c.b16 %v748, %v747
      %v762 = vpack.c.b16 %v750, %v749
      %v763 = vpack.c.b16 %v752, %v751
      %v764 = vpack.c.b16 %v754, %v753
      %v765 = vpack.c.b16 %v756, %v755
      %v766 = vpack.c.b16 %v758, %v757
      %767 = vrot.lane.b32.xlu0 %v759, 120
      %v768 = vpop.permute.xlu0 %767
      %769 = vrot.lane.b32.xlu0 %v760, 120
      %v770 = vpop.permute.xlu0 %769
      %771 = vrot.lane.b32.xlu0 %v761, 120
      %v772 = vpop.permute.xlu0 %771
      %773 = vrot.lane.b32.xlu0 %v762, 120
      %v774 = vpop.permute.xlu0 %773
      %775 = vrot.lane.b32.xlu0 %v763, 120
      %v776 = vpop.permute.xlu0 %775
      %777 = vrot.lane.b32.xlu0 %v764, 120
      %v778 = vpop.permute.xlu0 %777
      %779 = vrot.lane.b32.xlu0 %v765, 120
      %v780 = vpop.permute.xlu0 %779
      %781 = vrot.lane.b32.xlu0 %v766, 120
      %v782 = vpop.permute.xlu0 %781
      %791 = vmatpush.bf16.msra.mxu0 %v782
      %792 = vmatpush.bf16.msra.mxu0 %v780
      %793 = vmatpush.bf16.msra.mxu0 %v778
      %794 = vmatpush.bf16.msra.mxu0 %v776
      %795 = vmatpush.bf16.msra.mxu0 %v774
      %796 = vmatpush.bf16.msra.mxu0 %v772
      %797 = vmatpush.bf16.msra.mxu0 %v770
      %798 = vmatpush.bf16.msra.mxu0 %v768
      %799 = vmatmul.bf16.gmra.mxu0 %v725
      %v800 = vpop.f32.mrf.mxu0
      %v801 = vadd.f32 0.0, %v800
      %v802 = vpop.f32.mrf.mxu0
      %v803 = vadd.f32 0.0, %v802
      %804 = vmatmul.bf16.gmra.mxu0 %v726
      %v805 = vpop.f32.mrf.mxu0
      %v806 = vadd.f32 0.0, %v805
      %v807 = vpop.f32.mrf.mxu0
      %v808 = vadd.f32 0.0, %v807
      %809 = vdwg.mxu0
      %s810 = scalar_lea.vmem [#allocation4], 32
      %v811 = vld [vmem:[%s810] sm:$0xff]
      %v812 = vld [vmem:[%s810 + $0x8] sm:$0xff]
      %v813 = vld [vmem:[%s810 + $0x10] sm:$0xff]
      %v814 = vld [vmem:[%s810 + $0x18] sm:$0xff]
      %816 = vset.pattern.permute.xlu0 0
      %817 = vperm.xlu0 %816, %v645
      %v818 = vpop.permute.xlu0 %817
      %821 = vset.pattern.permute.xlu0 0
      %822 = vperm.xlu0 %821, %v647
      %v823 = vpop.permute.xlu0 %822
      %826 = vset.pattern.permute.xlu0 0
      %827 = vperm.xlu0 %826, %v649
      %v828 = vpop.permute.xlu0 %827
      %831 = vset.pattern.permute.xlu0 0
      %832 = vperm.xlu0 %831, %v651
      %v833 = vpop.permute.xlu0 %832
      %v835 = vmul.f32 %v818, %v811
      %v836 = vmul.f32 %v823, %v812
      %v837 = vmul.f32 %v828, %v813
      %v838 = vmul.f32 %v833, %v814
      %v839 = vadd.f32 %v835, %v801
      %v840 = vadd.f32 %v836, %v803
      %v841 = vadd.f32 %v837, %v806
      %v842 = vadd.f32 %v838, %v808
      %843 = vst.msk [vmem:[%s810] sm:$0xff] %vm568, %v839
      %844 = vst.msk [vmem:[%s810 + $0x8] sm:$0xff] %vm568, %v840
      %845 = vst.msk [vmem:[%s810 + $0x10] sm:$0xff] %vm568, %v841
      %846 = vst.msk [vmem:[%s810 + $0x18] sm:$0xff] %vm568, %v842
      %847 = vst.msk [vmem:[%s623] sm:$0xff] %vm442, %v636
      %848 = vst.msk [vmem:[%s623 + $0x8] sm:$0xff] %vm442, %v637
      %849 = vst.msk [vmem:[%s623 + $0x10] sm:$0xff] %vm442, %v638
      %850 = vst.msk [vmem:[%s623 + $0x18] sm:$0xff] %vm442, %v639
      // Predicated region
      $region41: #{gat_forward.1} parent=35 // pred_check
        %p851 = pneg %p265
      $region42: #{gat_forward.1} parent=35 // pred_check_branch
        %853 = sbr.rel (%p851) target = $region44
      $region43: #{gat_forward.1} parent=35 // pred_region
        %v854 = vld [vmem:[#allocation2] sm:$0xff]
        %v855 = vld [vmem:[#allocation2 + $0x8] sm:$0xff]
        %v856 = vld [vmem:[#allocation2 + $0x10] sm:$0xff]
        %v857 = vld [vmem:[#allocation2 + $0x18] sm:$0xff]
        %vm858 = vcmp.gt.f32.partialorder %v854, -1e+20
        %vm859 = vcmp.gt.f32.partialorder %v855, -1e+20
        %vm860 = vcmp.gt.f32.partialorder %v856, -1e+20
        %vm861 = vcmp.gt.f32.partialorder %v857, -1e+20
        %v862 = vsel %vm858, 1, 0
        %v863 = vsel %vm859, 1, 0
        %v864 = vsel %vm860, 1, 0
        %v865 = vsel %vm861, 1, 0
        %v866 = vcvt.s32.f32 %v862
        %v867 = vcvt.s32.f32 %v863
        %v868 = vcvt.s32.f32 %v864
        %v869 = vcvt.s32.f32 %v865
        %v870 = vld [vmem:[#allocation3] sm:$0xff]
        %v871 = vld [vmem:[#allocation3 + $0x8] sm:$0xff]
        %v872 = vld [vmem:[#allocation3 + $0x10] sm:$0xff]
        %v873 = vld [vmem:[#allocation3 + $0x18] sm:$0xff]
        %v874 = vmax.f32 %v870, 1e-16
        %v875 = vmax.f32 %v871, 1e-16
        %v876 = vmax.f32 %v872, 1e-16
        %v877 = vmax.f32 %v873, 1e-16
        %v878 = vrcp.pop %v874
        %v879 = vrcp.pop %v875
        %v880 = vrcp.pop %v876
        %v881 = vrcp.pop %v877
        %v882 = vmul.f32 %v878, %v866
        %v883 = vmul.f32 %v879, %v867
        %v884 = vmul.f32 %v880, %v868
        %v885 = vmul.f32 %v881, %v869
        %v886 = vld [vmem:[#allocation4] sm:$0xff]
        %v887 = vld [vmem:[#allocation4 + $0x8] sm:$0xff]
        %v888 = vld [vmem:[#allocation4 + $0x10] sm:$0xff]
        %v889 = vld [vmem:[#allocation4 + $0x18] sm:$0xff]
        %891 = vset.pattern.permute.xlu0 0
        %892 = vperm.xlu0 %891, %v882
        %v893 = vpop.permute.xlu0 %892
        %896 = vset.pattern.permute.xlu0 0
        %897 = vperm.xlu0 %896, %v883
        %v898 = vpop.permute.xlu0 %897
        %901 = vset.pattern.permute.xlu0 0
        %902 = vperm.xlu0 %901, %v884
        %v903 = vpop.permute.xlu0 %902
        %906 = vset.pattern.permute.xlu0 0
        %907 = vperm.xlu0 %906, %v885
        %v908 = vpop.permute.xlu0 %907
        %v910 = vmul.f32 %v886, %v893
        %v911 = vmul.f32 %v887, %v898
        %v912 = vmul.f32 %v888, %v903
        %v913 = vmul.f32 %v889, %v908
        %914 = vst.msk [vmem:[%s261] sm:$0xff] %vm568, %v910
        %915 = vst.msk [vmem:[%s261 + $0x8] sm:$0xff] %vm568, %v911
        %916 = vst.msk [vmem:[%s261 + $0x10] sm:$0xff] %vm568, %v912
        %917 = vst.msk [vmem:[%s261 + $0x18] sm:$0xff] %vm568, %v913
        %v918 = vld [vmem:[%s623] sm:$0xff]
        %v919 = vld [vmem:[%s623 + $0x8] sm:$0xff]
        %v920 = vld [vmem:[%s623 + $0x10] sm:$0xff]
        %v921 = vld [vmem:[%s623 + $0x18] sm:$0xff]
        %vm922 = vcmp.gt.f32.partialorder %v918, -1e+20
        %vm923 = vcmp.gt.f32.partialorder %v919, -1e+20
        %vm924 = vcmp.gt.f32.partialorder %v920, -1e+20
        %vm925 = vcmp.gt.f32.partialorder %v921, -1e+20
        %v926 = vsel %vm922, 1, 0
        %v927 = vsel %vm923, 1, 0
        %v928 = vsel %vm924, 1, 0
        %v929 = vsel %vm925, 1, 0
        %v930 = vcvt.s32.f32 %v926
        %v931 = vcvt.s32.f32 %v927
        %v932 = vcvt.s32.f32 %v928
        %v933 = vcvt.s32.f32 %v929
        %v934 = vld [vmem:[%s684] sm:$0xff]
        %v935 = vld [vmem:[%s684 + $0x8] sm:$0xff]
        %v936 = vld [vmem:[%s684 + $0x10] sm:$0xff]
        %v937 = vld [vmem:[%s684 + $0x18] sm:$0xff]
        %v938 = vmax.f32 %v934, 1e-16
        %v939 = vmax.f32 %v935, 1e-16
        %v940 = vmax.f32 %v936, 1e-16
        %v941 = vmax.f32 %v937, 1e-16
        %v942 = vrcp.pop %v938
        %v943 = vrcp.pop %v939
        %v944 = vrcp.pop %v940
        %v945 = vrcp.pop %v941
        %v946 = vmul.f32 %v942, %v930
        %v947 = vmul.f32 %v943, %v931
        %v948 = vmul.f32 %v944, %v932
        %v949 = vmul.f32 %v945, %v933
        %v950 = vld [vmem:[%s810] sm:$0xff]
        %v951 = vld [vmem:[%s810 + $0x8] sm:$0xff]
        %v952 = vld [vmem:[%s810 + $0x10] sm:$0xff]
        %v953 = vld [vmem:[%s810 + $0x18] sm:$0xff]
        %955 = vset.pattern.permute.xlu0 0
        %956 = vperm.xlu0 %955, %v946
        %v957 = vpop.permute.xlu0 %956
        %960 = vset.pattern.permute.xlu0 0
        %961 = vperm.xlu0 %960, %v947
        %v962 = vpop.permute.xlu0 %961
        %965 = vset.pattern.permute.xlu0 0
        %966 = vperm.xlu0 %965, %v948
        %v967 = vpop.permute.xlu0 %966
        %970 = vset.pattern.permute.xlu0 0
        %971 = vperm.xlu0 %970, %v949
        %v972 = vpop.permute.xlu0 %971
        %v974 = vmul.f32 %v950, %v957
        %v975 = vmul.f32 %v951, %v962
        %v976 = vmul.f32 %v952, %v967
        %v977 = vmul.f32 %v953, %v972
        %982 = vrot.lane.b32.xlu0 %v974, 8
        %v983 = vpop.permute.xlu0 %982
        %984 = vrot.lane.b32.xlu0 %v975, 8
        %v985 = vpop.permute.xlu0 %984
        %986 = vrot.lane.b32.xlu0 %v976, 8
        %v987 = vpop.permute.xlu0 %986
        %988 = vrot.lane.b32.xlu0 %v977, 8
        %v989 = vpop.permute.xlu0 %988
        %vm994 = vcmask 130112
        %995 = vst.msk [vmem:[%s261] sm:$0xff] %vm994, %v983
        %996 = vst.msk [vmem:[%s261 + $0x8] sm:$0xff] %vm994, %v985
        %997 = vst.msk [vmem:[%s261 + $0x10] sm:$0xff] %vm994, %v987
        %998 = vst.msk [vmem:[%s261 + $0x18] sm:$0xff] %vm994, %v989
      $region44: #{gat_forward.1} parent=35 // pred_fallthru
        _
      %s999 = smul.u32 4, %s19
      %p1000 = scmp.lt.s32.totalorder %s999, 15
      %s1001 = scalar_select %p1000, %s999, 15
      %s1002 = smul.addr %s1001, 8
      %s1003 = scalar_lea.vmem %s4, %s1002
      // Predicated region
      $region45: #{gat_forward.1} parent=35 // pred_check
        %p1004 = pneg %p146
      $region46: #{gat_forward.1} parent=35 // pred_check_branch
        %1006 = sbr.rel (%p1004) target = $region48
      $region47: #{gat_forward.1} parent=35 // pred_region
        %s1007 = smul.u32 4, %s19
      $region48: #{gat_forward.1} parent=35 // pred_fallthru
        _
    $region36: #{gat_forward.1} parent=5 // pred_fallthru
      _
    %p1008 = scmp.le.s32.totalorder 2, %s10
    // Predicated region
    $region49: #{gat_forward.1} parent=5 // pred_check
      %p1009 = pneg %p1008
    $region50: #{gat_forward.1} parent=5 // pred_check_branch
      %1011 = sbr.rel (%p1009) target = $region52
    $region51: #{gat_forward.1} parent=5 // pred_region
      %s1012 = ssub.s32 %s10, 2
      // Predicated region
      $region53: #{gat_forward.1} parent=51 // pred_check
        %p1013 = pneg %p152
      $region54: #{gat_forward.1} parent=51 // pred_check_branch
        %1015 = sbr.rel (%p1013) target = $region56
      $region55: #{gat_forward.1} parent=51 // pred_region
        %s1016 = smul.u32 4, %s21
        %p1017 = scmp.lt.s32.totalorder %s1016, 15
        %s1018 = scalar_select %p1017, %s1016, 15
        %s1019 = smul.addr %s1018, 8
        %s1020 = scalar_lea.vmem %s4, %s1019
      $region56: #{gat_forward.1} parent=51 // pred_fallthru
        _
    $region52: #{gat_forward.1} parent=5 // pred_fallthru
      _
  $region6: #{gat_forward.1} parent=0 // loop_footer
    %s14 = sadd.s32 1, %s10
  $region7: #{gat_forward.1} parent=0 // loop_footer_branch
    %9 = sbr.rel target = $region3
  $region8: #{gat_forward.1} parent=0 // loop_exit
    _

</llo_original>
